<compile_context>
chip_gen: v6e
topology: v6e:2x2x1
jax: 0.10.0
libtpu: 0.0.40
codegen_flags: <defaults>
</compile_context>

<pallas_src>
import functools

import jax
import jax.numpy as jnp
from jax.experimental import pallas as pl
from jax.experimental.pallas import tpu as pltpu

_PAIRWISE_EPS = 1e-6  # matches torch.nn.functional.pairwise_distance default eps


def _triplet_loss_kernel(anchor_ref, positive_ref, negative_ref, out_ref,
                         *, margin, batch, tile_b):
    # anchor/positive/negative refs: (tile_b, D) blocks in VMEM
    # out_ref: (1, 1) partial-sum slot in SMEM for this grid step
    a = anchor_ref[...].astype(jnp.float32)
    p = positive_ref[...].astype(jnp.float32)
    n = negative_ref[...].astype(jnp.float32)

    # F.pairwise_distance(p=2): ||x1 - x2 + eps||_2 along the feature axis.
    dp = a - p + _PAIRWISE_EPS
    dn = a - n + _PAIRWISE_EPS
    d_pos = jnp.sqrt(jnp.sum(dp * dp, axis=-1, keepdims=True))   # (tile_b, 1)
    d_neg = jnp.sqrt(jnp.sum(dn * dn, axis=-1, keepdims=True))   # (tile_b, 1)

    loss = jnp.maximum(d_pos - d_neg + jnp.float32(margin), 0.0)  # (tile_b, 1)

    # Mask rows that fall past the real batch (last, partially-filled tile).
    row = (pl.program_id(0) * tile_b
           + jax.lax.broadcasted_iota(jnp.int32, (tile_b, 1), 0))
    loss = jnp.where(row < batch, loss, 0.0)

    out_ref[0, 0] = jnp.sum(loss)


def _pick_tile_b(batch, feat_dim, itemsize, vmem_budget_bytes=24 * 1024 * 1024):
    """Largest batch tile s.t. 3 inputs x 2 buffers fit the VMEM budget."""
    per_row = 3 * 2 * feat_dim * itemsize
    tile = max(8, min(1024, vmem_budget_bytes // max(per_row, 1)))
    tile = max(8, (tile // 8) * 8)          # f32 sublane multiple
    if tile >= batch:
        return batch                        # single full-array block
    return tile


def triplet_loss(anchor, positive, negative, margin=1.0):
    """Pallas port of TripletLoss.forward.

    anchor, positive, negative: (B, D) float arrays.
    Returns a float32 scalar.
    """
    B, D = anchor.shape
    tile_b = _pick_tile_b(B, D, jnp.dtype(anchor.dtype).itemsize)
    num_blocks = pl.cdiv(B, tile_b)

    feat_spec = pl.BlockSpec((tile_b, D), lambda i: (i, 0))
    partial_spec = pl.BlockSpec((1, 1), lambda i: (i, 0),
                                memory_space=pltpu.MemorySpace.SMEM)

    partials = pl.pallas_call(
        functools.partial(_triplet_loss_kernel,
                          margin=float(margin), batch=B, tile_b=tile_b),
        out_shape=jax.ShapeDtypeStruct((num_blocks, 1), jnp.float32),
        grid=(num_blocks,),
        in_specs=[feat_spec, feat_spec, feat_spec],
        out_specs=partial_spec,
        compiler_params=pltpu.CompilerParams(
            dimension_semantics=("parallel",)),
    )(anchor, positive, negative)

    # Final reduction + mean over the *global* batch in the wrapper
    # (keeps the grid axis embarrassingly parallel for v7x's two TCs).
    return jnp.sum(partials) * jnp.float32(1.0 / B)


def _reference_loss(anchor, positive, negative, margin=1.0):
    # Pure-JAX reference mirroring the PyTorch semantics.
    a = anchor.astype(jnp.float32)
    p = positive.astype(jnp.float32)
    n = negative.astype(jnp.float32)
    d_pos = jnp.sqrt(jnp.sum((a - p + _PAIRWISE_EPS) ** 2, axis=-1))
    d_neg = jnp.sqrt(jnp.sum((a - n + _PAIRWISE_EPS) ** 2, axis=-1))
    loss = jnp.maximum(d_pos - d_neg + margin, 0.0)
    return jnp.mean(loss)


if __name__ == "__main__":
    key = jax.random.PRNGKey(0)
    k_a, k_p, k_n = jax.random.split(key, 3)

    B, D = 8, 32
    anchor = jax.random.normal(k_a, (B, D), dtype=jnp.float32)
    positive = jax.random.normal(k_p, (B, D), dtype=jnp.float32)
    negative = jax.random.normal(k_n, (B, D), dtype=jnp.float32)

    loss = triplet_loss(anchor, positive, negative, margin=1.0)
    loss = jax.block_until_ready(loss)

    ref = _reference_loss(anchor, positive, negative, margin=1.0)
    assert jnp.allclose(loss, ref, rtol=1e-5, atol=1e-6), (loss, ref)

    print("KERNEL_OK")
</pallas_src>

<mosaic_0001>
module attributes {stable_mosaic.version = 11 : i64} {
  func.func @_triplet_loss_kernel(%arg0: i32, %arg1: memref<8x32xf32, #tpu.memory_space<vmem>>, %arg2: memref<8x32xf32, #tpu.memory_space<vmem>>, %arg3: memref<8x32xf32, #tpu.memory_space<vmem>>, %arg4: memref<1x1xf32, #tpu.memory_space<smem>>) attributes {dimension_semantics = [#tpu.dimension_semantics<parallel>], iteration_bounds = array<i64: 1>, scalar_prefetch = 0 : i64, scratch_operands = 0 : i64, tpu.core_type = #tpu.core_type<tc>, window_params = [{transform_indices = @transform_0, window_bounds = array<i64: 8, 32>}, {transform_indices = @transform_1, window_bounds = array<i64: 8, 32>}, {transform_indices = @transform_2, window_bounds = array<i64: 8, 32>}, {transform_indices = @transform_3, window_bounds = array<i64: 1, 1>}]} {
    %c0 = arith.constant 0 : index
    %c0_0 = arith.constant 0 : index
    %0 = vector.load %arg1[%c0, %c0_0] : memref<8x32xf32, #tpu.memory_space<vmem>>, vector<8x32xf32>
    %c0_1 = arith.constant 0 : index
    %c0_2 = arith.constant 0 : index
    %1 = vector.load %arg2[%c0_1, %c0_2] : memref<8x32xf32, #tpu.memory_space<vmem>>, vector<8x32xf32>
    %c0_3 = arith.constant 0 : index
    %c0_4 = arith.constant 0 : index
    %2 = vector.load %arg3[%c0_3, %c0_4] : memref<8x32xf32, #tpu.memory_space<vmem>>, vector<8x32xf32>
    %3 = arith.subf %0, %1 : vector<8x32xf32>
    %cst = arith.constant 9.99999997E-7 : f32
    %4 = vector.broadcast %cst : f32 to vector<8x32xf32>
    %5 = arith.addf %3, %4 : vector<8x32xf32>
    %6 = arith.subf %0, %2 : vector<8x32xf32>
    %cst_5 = arith.constant 9.99999997E-7 : f32
    %7 = vector.broadcast %cst_5 : f32 to vector<8x32xf32>
    %8 = arith.addf %6, %7 : vector<8x32xf32>
    %9 = arith.mulf %5, %5 : vector<8x32xf32>
    %cst_6 = arith.constant dense<0.000000e+00> : vector<8xf32>
    %10 = vector.multi_reduction <add>, %9, %cst_6 [1] : vector<8x32xf32> to vector<8xf32>
    %11 = vector.shape_cast %10 : vector<8xf32> to vector<8x1xf32>
    %12 = math.sqrt %11 : vector<8x1xf32>
    %13 = arith.mulf %8, %8 : vector<8x32xf32>
    %cst_7 = arith.constant dense<0.000000e+00> : vector<8xf32>
    %14 = vector.multi_reduction <add>, %13, %cst_7 [1] : vector<8x32xf32> to vector<8xf32>
    %15 = vector.shape_cast %14 : vector<8xf32> to vector<8x1xf32>
    %16 = math.sqrt %15 : vector<8x1xf32>
    %17 = arith.subf %12, %16 : vector<8x1xf32>
    %cst_8 = arith.constant 1.000000e+00 : f32
    %18 = vector.broadcast %cst_8 : f32 to vector<8x1xf32>
    %19 = arith.addf %17, %18 : vector<8x1xf32>
    %cst_9 = arith.constant 0.000000e+00 : f32
    %20 = vector.broadcast %cst_9 : f32 to vector<8x1xf32>
    %21 = arith.maximumf %19, %20 : vector<8x1xf32>
    %c8_i32 = arith.constant 8 : i32
    %22 = arith.muli %arg0, %c8_i32 : i32
    %23 = tpu.iota {dimensions = array<i32: 0>} : vector<8x1xi32>
    %24 = vector.broadcast %22 : i32 to vector<8x1xi32>
    %25 = arith.addi %24, %23 : vector<8x1xi32>
    %c8_i32_10 = arith.constant 8 : i32
    %26 = vector.broadcast %c8_i32_10 : i32 to vector<8x1xi32>
    %27 = arith.cmpi slt, %25, %26 : vector<8x1xi32>
    %cst_11 = arith.constant 0.000000e+00 : f32
    %28 = vector.broadcast %cst_11 : f32 to vector<8x1xf32>
    %29 = arith.select %27, %21, %28 : vector<8x1xi1>, vector<8x1xf32>
    %30 = vector.shape_cast %29 : vector<8x1xf32> to vector<1x8x1xf32>
    %cst_12 = arith.constant dense<0.000000e+00> : vector<1xf32>
    %31 = vector.multi_reduction <add>, %30, %cst_12 [1, 2] : vector<1x8x1xf32> to vector<1xf32>
    %32 = vector.shape_cast %31 : vector<1xf32> to vector<1x1x1xf32>
    %33 = vector.extract %32[0, 0, 0] : f32 from vector<1x1x1xf32>
    %c0_13 = arith.constant 0 : index
    %c0_14 = arith.constant 0 : index
    %34 = memref.load %arg4[%c0_13, %c0_14] : memref<1x1xf32, #tpu.memory_space<smem>>
    memref.store %33, %arg4[%c0_13, %c0_14] : memref<1x1xf32, #tpu.memory_space<smem>>
    return
  }
  func.func @transform_0(%arg0: i32) -> (i32, i32) {
    %c0_i32 = arith.constant 0 : i32
    %c0_i32_0 = arith.constant 0 : i32
    return %arg0, %c0_i32 : i32, i32
  }
  func.func @transform_1(%arg0: i32) -> (i32, i32) {
    %c0_i32 = arith.constant 0 : i32
    %c0_i32_0 = arith.constant 0 : i32
    return %arg0, %c0_i32 : i32, i32
  }
  func.func @transform_2(%arg0: i32) -> (i32, i32) {
    %c0_i32 = arith.constant 0 : i32
    %c0_i32_0 = arith.constant 0 : i32
    return %arg0, %c0_i32 : i32, i32
  }
  func.func @transform_3(%arg0: i32) -> (i32, i32) {
    %c0_i32 = arith.constant 0 : i32
    %c0_i32_0 = arith.constant 0 : i32
    return %arg0, %c0_i32 : i32, i32
  }
}

</mosaic_0001>

<llo_original>
// kernel: tpu_custom_call.1
$region0: #{tpu_custom_call.1}
  #allocation0 [shape = 'u32[]', space=smem, size = 0x4, offset = 0x4, fixed_abs, tag = 'smem constant byte address 0x4 - core index']
  #allocation1 [shape = 'u32[144,128]{1,0:T(1,128)}', space=vmem, size = 0x12000, scoped, tag = 'internal scratch']
  %s0 = inlined_call_operand.hbm [shape: f32[8,32], index: 0, kind: input, shape index: {}]
  %s1 = inlined_call_operand.hbm [shape: f32[8,32], index: 1, kind: input, shape index: {}]
  %s2 = inlined_call_operand.hbm [shape: f32[8,32], index: 2, kind: input, shape index: {}]
  %s3 = inlined_call_operand.hbm [shape: f32[1,1], index: 3, kind: output, shape index: {}]
  %s4 = sld [smem:[#allocation0]]
  $region34: #{tpu_custom_call.1} parent=0
    _
  %s6 = ssub.s32 1, %s4
  %s7 = scalar_select 0, %s6, %s4
  $region1: #{tpu_custom_call.1} parent=0
    #allocation2 [shape = 'u8[4096]{0}', space=vmem, size = 0x1000, scoped, tag = 'input window, operand 0, single buffered']
    #allocation3 [shape = 's32[1]{0}', space=sflag, size = 0x4, scoped, tag = 'scoped memory for tpu_custom_call.1']
    #allocation4 [shape = 's32[1]{0}', space=sflag, size = 0x4, scoped, tag = 'scoped memory for tpu_custom_call.1']
    #allocation5 [shape = 'u8[4096]{0}', space=vmem, size = 0x1000, scoped, tag = 'input window, operand 1, single buffered']
    #allocation6 [shape = 's32[1]{0}', space=sflag, size = 0x4, scoped, tag = 'scoped memory for tpu_custom_call.1']
    #allocation7 [shape = 'u8[4096]{0}', space=vmem, size = 0x1000, scoped, tag = 'input window, operand 2, single buffered']
    #allocation8 [shape = 'u8[512]{0}', space=smem, size = 0x200, scoped, tag = 'output window, operand 0, single buffered']
    %8 = vsyncpa [#allocation3], 0
    %9 = vsyncpa [#allocation6], 0
    %10 = vsyncpa [#allocation4], 0
    // Predicated region
    $region2: #{tpu_custom_call.1} parent=1 // pred_check
      _
    $region3: #{tpu_custom_call.1} parent=1 // pred_check_branch
      %12 = sbr.rel (0) target = $region5
    $region4: #{tpu_custom_call.1} parent=1 // pred_region
      %s14 = ssub.s32 128, 128
      %15 = vsyncadd [#allocation3], %s14
      %s17 = sshll.u32 [#allocation2], 4
      %s18 = int_to_ptr.vmem [resolvable:$true] %s17
      %20 = dma.hbm_to_vmem [thread:$0]  %s0, 128, %s18, [#allocation3]
    $region5: #{tpu_custom_call.1} parent=1 // pred_fallthru
      _
    // Predicated region
    $region6: #{tpu_custom_call.1} parent=1 // pred_check
      _
    $region7: #{tpu_custom_call.1} parent=1 // pred_check_branch
      %22 = sbr.rel (0) target = $region9
    $region8: #{tpu_custom_call.1} parent=1 // pred_region
      %s24 = ssub.s32 128, 128
      %25 = vsyncadd [#allocation6], %s24
      %s27 = sshll.u32 [#allocation5], 4
      %s28 = int_to_ptr.vmem [resolvable:$true] %s27
      %30 = dma.hbm_to_vmem [thread:$0]  %s1, 128, %s28, [#allocation6]
    $region9: #{tpu_custom_call.1} parent=1 // pred_fallthru
      _
    // Predicated region
    $region10: #{tpu_custom_call.1} parent=1 // pred_check
      _
    $region11: #{tpu_custom_call.1} parent=1 // pred_check_branch
      %32 = sbr.rel (0) target = $region13
    $region12: #{tpu_custom_call.1} parent=1 // pred_region
      %s34 = ssub.s32 128, 128
      %35 = vsyncadd [#allocation6], %s34
      %s37 = sshll.u32 [#allocation7], 4
      %s38 = int_to_ptr.vmem [resolvable:$true] %s37
      %40 = dma.hbm_to_vmem [thread:$0]  %s2, 128, %s38, [#allocation6]
    $region13: #{tpu_custom_call.1} parent=1 // pred_fallthru
      _
    // Predicated region
    $region14: #{tpu_custom_call.1} parent=1 // pred_check
      _
    $region15: #{tpu_custom_call.1} parent=1 // pred_check_branch
      %42 = sbr.rel (0) target = $region17
    $region16: #{tpu_custom_call.1} parent=1 // pred_region
      %43 = dma.done [#allocation3], 128
    $region17: #{tpu_custom_call.1} parent=1 // pred_fallthru
      _
    // Predicated region
    $region18: #{tpu_custom_call.1} parent=1 // pred_check
      _
    $region19: #{tpu_custom_call.1} parent=1 // pred_check_branch
      %45 = sbr.rel (0) target = $region21
    $region20: #{tpu_custom_call.1} parent=1 // pred_region
      %46 = dma.done [#allocation6], 128
    $region21: #{tpu_custom_call.1} parent=1 // pred_fallthru
      _
    // Predicated region
    $region22: #{tpu_custom_call.1} parent=1 // pred_check
      _
    $region23: #{tpu_custom_call.1} parent=1 // pred_check_branch
      %48 = sbr.rel (0) target = $region25
    $region24: #{tpu_custom_call.1} parent=1 // pred_region
      %49 = dma.done [#allocation6], 128
    $region25: #{tpu_custom_call.1} parent=1 // pred_fallthru
      _
    %v50 = vld [vmem:[#allocation2] sm:$0xff]
    %v51 = vld [vmem:[#allocation5] sm:$0xff]
    %v52 = vld [vmem:[#allocation7] sm:$0xff]
    %v53 = vsub.f32 %v50, %v51
    %v54 = vadd.f32 %v53, 1e-06
    %v55 = vsub.f32 %v50, %v52
    %v56 = vadd.f32 %v55, 1e-06
    %v57 = vmul.f32 %v54, %v54
    %vm58 = vcmask 261120
    %v59 = vsel %vm58, %v57, 0.0
    %60 = vadd.xlane.f32.xlu0 %v59
    %v61 = vpop.xlane.xlu0 %60
    %v62 = vrsqrt.pop %v61
    %v63 = vmul.f32 %v61, %v62
    %vm64 = vcmp.eq.f32.partialorder %v61, inf
    %v65 = vsel %vm64, %v61, %v63
    %vm66 = vcmp.eq.f32.partialorder %v61, 0.0
    %v67 = vand.u32 %v61, 2147483648
    %v68 = vsel %vm66, %v67, %v65
    %v69 = vmul.f32 %v56, %v56
    %v70 = vsel %vm58, %v69, 0.0
    %71 = vadd.xlane.f32.xlu0 %v70
    %v72 = vpop.xlane.xlu0 %71
    %v73 = vrsqrt.pop %v72
    %v74 = vmul.f32 %v72, %v73
    %vm75 = vcmp.eq.f32.partialorder %v72, inf
    %v76 = vsel %vm75, %v72, %v74
    %vm77 = vcmp.eq.f32.partialorder %v72, 0.0
    %v78 = vand.u32 %v72, 2147483648
    %v79 = vsel %vm77, %v78, %v76
    %v80 = vsub.f32 %v68, %v79
    %v81 = vadd.f32 %v80, 1.0
    %v82 = vmax.f32 %v81, 0.0
    %s83 = smul.u32 0, 8
    %v84 = vlaneseq
    %v85 = vshrl.u32 %v84, 7
    %v86 = vstv %s83
    %v87 = vadd.s32 %v86, %v85
    %vm88 = vcmp.lt.s32.totalorder %v87, 8
    %v89 = vsel %vm88, %v82, 0.0
    %vm90 = vcmask 7168
    %v91 = vsel %vm90, %v89, 0.0
    %92 = vadd.xlane.f32.xlu0 %v91
    %v93 = vpop.xlane.xlu0 %92
    %v94 = vrot.slane %v93, 4
    %v95 = vadd.f32 %v93, %v94
    %v96 = vrot.slane %v95, 2
    %v97 = vadd.f32 %v95, %v96
    %v98 = vrot.slane %v97, 1
    %v99 = vadd.f32 %v97, %v98
    %s100 = vtos %v99
    %s101 = scalar_lea.smem [#allocation8], 0
    %102 = sst [smem:[%s101]] %s100
    // Predicated region
    $region26: #{tpu_custom_call.1} parent=1 // pred_check
      _
    $region27: #{tpu_custom_call.1} parent=1 // pred_check_branch
      %104 = sbr.rel (0) target = $region29
    $region28: #{tpu_custom_call.1} parent=1 // pred_region
      %s106 = ssub.s32 16, 16
      %107 = vsyncadd [#allocation4], %s106
      %110 = dma.smem_to_hbm [#allocation8], 16, %s3, [#allocation4]
    $region29: #{tpu_custom_call.1} parent=1 // pred_fallthru
      _
    // Predicated region
    $region30: #{tpu_custom_call.1} parent=1 // pred_check
      _
    $region31: #{tpu_custom_call.1} parent=1 // pred_check_branch
      %112 = sbr.rel (0) target = $region33
    $region32: #{tpu_custom_call.1} parent=1 // pred_region
      %113 = dma.done [#allocation4], 16
    $region33: #{tpu_custom_call.1} parent=1 // pred_fallthru
      _
    %114 = sfence
    %115 = vsyncpa [#allocation3], 1
    %116 = vsyncpa [#allocation6], 1
    %117 = vsyncpa [#allocation4], 1

</llo_original>
